<compile_context>
chip_gen: v5e
topology: v5e:2x2
jax: 0.10.0
libtpu: 0.0.40
codegen_flags: <defaults>
</compile_context>

<pallas_src>
import functools

import jax
import jax.numpy as jnp
from jax import lax
from jax.experimental import pallas as pl
from jax.experimental.pallas import tpu as pltpu


# -----------------------------------------------------------------------------
# Pallas kernel
# -----------------------------------------------------------------------------
def repmixer_kernel(mask_ref, w_ref, x_ref, o_ref):
    """One (channel-tile, full image) block.

    mask_ref : (8, HW)   precomputed border masks (f32 {0,1}); rows:
                         0 = left-valid  (col > 0)
                         1 = right-valid (col < W-1)
                         2 = up-valid    (p >= W)
                         3 = down-valid  (p < (H-1)*W), rows 4..7 unused.
    w_ref    : (tc, 128) packed per-channel params: lanes 0..8 = folded 3x3
                         taps (row-major (dh, dw); center tap carries
                         1 + alpha), lane 9 = folded bias.
    x_ref    : (tc, HW)  input plane, spatial flattened onto the lane axis.
    o_ref    : (tc, HW)  output.
    """
    x = x_ref[...].astype(jnp.float32)           # (tc, HW); f32 accumulate
    wp = w_ref[...].astype(jnp.float32)          # (tc, 128)
    masks = mask_ref[...]                        # (8, HW)  f32, VMEM-resident

    HW = x.shape[1]
    W = None  # W is baked into the shifts below via functools.partial closure

    # Per-lane border masks (broadcast over the channel sublanes).
    m_l = masks[0:1, :]
    m_r = masks[1:2, :]
    m_u = masks[2:3, :]
    m_d = masks[3:4, :]

    # Hoist the 10 per-channel scalars once per block: each (tc,1) column is
    # lane-broadcast a single time per grid step and reused across all
    # 128-lane chunks of HW by the MACs below.
    taps = [wp[:, k:k + 1] for k in range(9)]    # taps[(dh+1)*3 + (dw+1)]
    bias = wp[:, 9:10]

    # Horizontally shifted copies of x (XLU lane rolls), zeroed at the image
    # left/right border via the precomputed masks.
    # roll(x, s)[i] == x[(i - s) mod HW]  (np.roll semantics).
    x_l = pltpu.roll(x, shift=1, axis=1) * m_l          # x[h, w-1]
    x_r = pltpu.roll(x, shift=HW - 1, axis=1) * m_r     # x[h, w+1]

    # 1x3 horizontal MAC of each row, using the tap weights of row offset dh.
    def hconv(dh):
        base = (dh + 1) * 3
        return x_l * taps[base] + x * taps[base + 1] + x_r * taps[base + 2]

    # dh = 0 row (center tap carries the folded 1 + alpha) + folded bias.
    acc = hconv(0) + bias
    # dh = -1 / +1 rows: value from flat index p -/+ W, zeroed at row 0 / H-1.
    acc = acc + pltpu.roll(hconv(-1), shift=repmixer_kernel.W, axis=1) * m_u
    acc = acc + pltpu.roll(hconv(1), shift=HW - repmixer_kernel.W, axis=1) * m_d

    o_ref[...] = acc.astype(o_ref.dtype)


def _make_kernel(W):
    # Bind W (row stride in flattened-lane space) statically for the rolls.
    def kernel(mask_ref, w_ref, x_ref, o_ref):
        x = x_ref[...].astype(jnp.float32)
        wp = w_ref[...].astype(jnp.float32)
        masks = mask_ref[...]
        HW = x.shape[1]

        m_l = masks[0:1, :]
        m_r = masks[1:2, :]
        m_u = masks[2:3, :]
        m_d = masks[3:4, :]

        taps = [wp[:, k:k + 1] for k in range(9)]
        bias = wp[:, 9:10]

        x_l = pltpu.roll(x, shift=1, axis=1) * m_l
        x_r = pltpu.roll(x, shift=HW - 1, axis=1) * m_r

        def hconv(dh):
            base = (dh + 1) * 3
            return x_l * taps[base] + x * taps[base + 1] + x_r * taps[base + 2]

        acc = hconv(0) + bias
        acc = acc + pltpu.roll(hconv(-1), shift=W, axis=1) * m_u
        acc = acc + pltpu.roll(hconv(1), shift=HW - W, axis=1) * m_d
        o_ref[...] = acc.astype(o_ref.dtype)

    return kernel


def _pick_channel_tile(C, B, HW, itemsize, target_bytes=1 << 20,
                       min_grid_steps=8):
    """Channel tile = largest multiple-of-8 divisor of C whose (tc, HW) block
    fits `target_bytes`, *and* that leaves at least `min_grid_steps` grid
    steps (B * C // tc) so the pipeline can double-buffer.  Falls back to
    >= 4 steps, then to the largest fitting tile."""
    cands = [c for c in range(8, C + 1, 8) if C % c == 0] or [C]
    fitting = [c for c in cands if c * HW * itemsize <= target_bytes] or [cands[0]]
    for steps in (min_grid_steps, 4, 1):
        ok = [c for c in fitting if B * (C // c) >= steps]
        if ok:
            return ok[-1]
    return fitting[-1]


def repmixer_pallas(x, w3d, alpha, beta, bias):
    """x: (B, C, H, W).  w3d: (C,3,3).  alpha/beta/bias: (C,) folded scalars.

    x may be float32 or bfloat16 (HBM dtype); compute is f32 in-kernel.
    """
    B, C, H, W = x.shape
    HW = H * W
    xf = x.reshape(B, C, HW)                 # merge contiguous trailing dims (free)

    # Fold beta into the 3x3 taps and (1 + alpha) into the center tap:
    #   out = dwconv3x3(x; w_scaled) + bias          (exact rewrite)
    w_scaled = beta[:, None, None].astype(jnp.float32) * w3d.astype(jnp.float32)
    w_scaled = w_scaled.at[:, 1, 1].add(1.0 + alpha.astype(jnp.float32))

    # One lane-aligned per-channel parameter slab: taps 0..8, bias at lane 9.
    wpack = jnp.zeros((C, 128), jnp.float32)
    wpack = wpack.at[:, :9].set(w_scaled.reshape(C, 9))
    wpack = wpack.at[:, 9].set(bias.astype(jnp.float32))

    # Precomputed per-lane border masks (no in-kernel iota / integer modulo).
    p = jnp.arange(HW, dtype=jnp.int32)
    col = p % W
    masks = jnp.zeros((8, HW), jnp.float32)
    masks = masks.at[0].set((col > 0).astype(jnp.float32))
    masks = masks.at[1].set((col < W - 1).astype(jnp.float32))
    masks = masks.at[2].set((p >= W).astype(jnp.float32))
    masks = masks.at[3].set((p < (H - 1) * W).astype(jnp.float32))

    tc = _pick_channel_tile(C, B, HW, jnp.dtype(x.dtype).itemsize)
    # Batch innermost: the weight block index is constant over the inner loop
    # (Pallas skips its re-DMA) and the mask block is constant everywhere.
    grid = (C // tc, B)

    kernel = _make_kernel(W)
    out = pl.pallas_call(
        kernel,
        out_shape=jax.ShapeDtypeStruct((B, C, HW), x.dtype),
        grid_spec=pltpu.PrefetchScalarGridSpec(
            num_scalar_prefetch=0,
            grid=grid,
            in_specs=[
                pl.BlockSpec((8, HW), lambda c, b: (0, 0)),          # masks
                pl.BlockSpec((tc, 128), lambda c, b: (c, 0)),        # weights
                pl.BlockSpec((pl.Squeezed(), tc, HW),
                             lambda c, b: (b, c, 0)),                # x
            ],
            out_specs=pl.BlockSpec((pl.Squeezed(), tc, HW),
                                   lambda c, b: (b, c, 0)),
        ),
        compiler_params=pltpu.CompilerParams(
            dimension_semantics=("parallel", "parallel"),
            vmem_limit_bytes=32 * 1024 * 1024),
    )(masks, wpack, xf)
    return out.reshape(B, C, H, W)


# -----------------------------------------------------------------------------
# Pure-JAX reference that mirrors the (unfused) PyTorch forward pass
# -----------------------------------------------------------------------------
def repmixer_ref(x, p, eps=1e-5):
    C = x.shape[1]

    def bn(z, g, b, m, v):
        inv = g / jnp.sqrt(v + eps)
        return z * inv[None, :, None, None] + (b - m * inv)[None, :, None, None]

    dn = ("NCHW", "OIHW", "NCHW")
    # norm branch: BatchNorm only
    norm_out = bn(x, p["gn"], p["bn"], p["mn"], p["vn"])
    # mixer branches
    skip = bn(x, p["gs"], p["bs"], p["ms"], p["vs"])
    conv1 = lax.conv_general_dilated(x, p["w1"], (1, 1), "VALID",
                                     dimension_numbers=dn, feature_group_count=C)
    scale = bn(conv1, p["g1"], p["b1"], p["m1"], p["v1"])
    conv3 = lax.conv_general_dilated(x, p["w3"], (1, 1), ((1, 1), (1, 1)),
                                     dimension_numbers=dn, feature_group_count=C)
    branch = bn(conv3, p["g3"], p["b3"], p["m3"], p["v3"])
    mixer_out = skip + scale + branch
    return x + p["ls"][None] * (mixer_out - norm_out)


# -----------------------------------------------------------------------------
# Parameter folding (plain-JAX "setup" glue)
# -----------------------------------------------------------------------------
def fold_params(p, eps=1e-5):
    a_n = p["gn"] / jnp.sqrt(p["vn"] + eps)
    c_n = p["bn"] - p["mn"] * a_n
    a_s = p["gs"] / jnp.sqrt(p["vs"] + eps)
    c_s = p["bs"] - p["ms"] * a_s
    a_1 = p["g1"] / jnp.sqrt(p["v1"] + eps)
    c_1 = p["b1"] - p["m1"] * a_1
    a_3 = p["g3"] / jnp.sqrt(p["v3"] + eps)
    c_3 = p["b3"] - p["m3"] * a_3

    w1c = p["w1"][:, 0, 0, 0]          # depthwise 1x1 -> per-channel scalar
    ls = p["ls"][:, 0, 0]

    alpha = ls * (a_s - a_n + a_1 * w1c)
    beta = ls * a_3
    bias = ls * (c_s + c_1 + c_3 - c_n)
    w3d = p["w3"][:, 0]                # (C, 3, 3)
    return w3d, alpha, beta, bias


if __name__ == "__main__":
    B, C, H, W = 2, 32, 16, 16         # dim = 32, kernel_size = 3
    key = jax.random.PRNGKey(0)
    ks = jax.random.split(key, 20)

    x = jax.random.normal(ks[0], (B, C, H, W), jnp.float32)

    def bn_params(k0, k1, k2, k3):
        g = jax.random.uniform(k0, (C,), jnp.float32, 0.8, 1.2)
        b = 0.1 * jax.random.normal(k1, (C,), jnp.float32)
        m = 0.1 * jax.random.normal(k2, (C,), jnp.float32)
        v = jax.random.uniform(k3, (C,), jnp.float32, 0.5, 1.5)
        return g, b, m, v

    p = {}
    p["gn"], p["bn"], p["mn"], p["vn"] = bn_params(ks[1], ks[2], ks[3], ks[4])     # norm.rbr_skip
    p["gs"], p["bs"], p["ms"], p["vs"] = bn_params(ks[5], ks[6], ks[7], ks[8])     # mixer.rbr_skip
    p["g1"], p["b1"], p["m1"], p["v1"] = bn_params(ks[9], ks[10], ks[11], ks[12])  # mixer.rbr_scale.bn
    p["g3"], p["b3"], p["m3"], p["v3"] = bn_params(ks[13], ks[14], ks[15], ks[16]) # mixer.rbr_conv[0].bn
    p["w1"] = 0.1 * jax.random.normal(ks[17], (C, 1, 1, 1), jnp.float32)           # dw 1x1 conv weight
    p["w3"] = 0.1 * jax.random.normal(ks[18], (C, 1, 3, 3), jnp.float32)           # dw 3x3 conv weight
    # Module init is 1e-5 * ones((dim,1,1)); use a larger deterministic value so
    # the mixing term is numerically visible in the correctness check.
    p["ls"] = jnp.full((C, 1, 1), 0.1, jnp.float32)

    w3d, alpha, beta, bias = fold_params(p)

    out = repmixer_pallas(x, w3d, alpha, beta, bias)
    out = jax.block_until_ready(out)

    ref = repmixer_ref(x, p)
    assert out.shape == (B, C, H, W)
    assert jnp.allclose(out, ref, rtol=1e-4, atol=3e-5), (
        float(jnp.max(jnp.abs(out - ref))))

    print("KERNEL_OK")
</pallas_src>

<mosaic_0001>
module attributes {stable_mosaic.version = 11 : i64} {
  func.func @kernel(%arg0: i32, %arg1: i32, %arg2: memref<8x256xf32, #tpu.memory_space<vmem>>, %arg3: memref<8x128xf32, #tpu.memory_space<vmem>>, %arg4: memref<1x8x256xf32, #tpu.memory_space<vmem>>, %arg5: memref<1x8x256xf32, #tpu.memory_space<vmem>>) attributes {dimension_semantics = [#tpu.dimension_semantics<parallel>, #tpu.dimension_semantics<parallel>], iteration_bounds = array<i64: 4, 2>, scalar_prefetch = 0 : i64, scratch_operands = 0 : i64, tpu.core_type = #tpu.core_type<tc>, window_params = [{pipeline_mode = #tpu.pipeline_mode<synchronous>, transform_indices = @transform_0, window_bounds = array<i64: 8, 256>}, {transform_indices = @transform_1, window_bounds = array<i64: 8, 128>}, {transform_indices = @transform_2, window_bounds = array<i64: 1, 8, 256>}, {transform_indices = @transform_3, window_bounds = array<i64: 1, 8, 256>}]} {
    %c0 = arith.constant 0 : index
    %c0_0 = arith.constant 0 : index
    %c0_1 = arith.constant 0 : index
    %0 = vector.load %arg4[%c0, %c0_0, %c0_1] : memref<1x8x256xf32, #tpu.memory_space<vmem>>, vector<1x8x256xf32>
    %1 = vector.shape_cast %0 : vector<1x8x256xf32> to vector<8x256xf32>
    %c0_2 = arith.constant 0 : index
    %c0_3 = arith.constant 0 : index
    %2 = vector.load %arg3[%c0_2, %c0_3] : memref<8x128xf32, #tpu.memory_space<vmem>>, vector<8x128xf32>
    %c0_4 = arith.constant 0 : index
    %c0_5 = arith.constant 0 : index
    %3 = vector.load %arg2[%c0_4, %c0_5] : memref<8x256xf32, #tpu.memory_space<vmem>>, vector<8x256xf32>
    %4 = vector.extract_strided_slice %3 {offsets = [0, 0], sizes = [1, 256], strides = [1, 1]} : vector<8x256xf32> to vector<1x256xf32>
    %5 = vector.extract_strided_slice %3 {offsets = [1, 0], sizes = [1, 256], strides = [1, 1]} : vector<8x256xf32> to vector<1x256xf32>
    %6 = vector.extract_strided_slice %3 {offsets = [2, 0], sizes = [1, 256], strides = [1, 1]} : vector<8x256xf32> to vector<1x256xf32>
    %7 = vector.extract_strided_slice %3 {offsets = [3, 0], sizes = [1, 256], strides = [1, 1]} : vector<8x256xf32> to vector<1x256xf32>
    %8 = vector.extract_strided_slice %2 {offsets = [0, 0], sizes = [8, 1], strides = [1, 1]} : vector<8x128xf32> to vector<8x1xf32>
    %9 = vector.extract_strided_slice %2 {offsets = [0, 1], sizes = [8, 1], strides = [1, 1]} : vector<8x128xf32> to vector<8x1xf32>
    %10 = vector.extract_strided_slice %2 {offsets = [0, 2], sizes = [8, 1], strides = [1, 1]} : vector<8x128xf32> to vector<8x1xf32>
    %11 = vector.extract_strided_slice %2 {offsets = [0, 3], sizes = [8, 1], strides = [1, 1]} : vector<8x128xf32> to vector<8x1xf32>
    %12 = vector.extract_strided_slice %2 {offsets = [0, 4], sizes = [8, 1], strides = [1, 1]} : vector<8x128xf32> to vector<8x1xf32>
    %13 = vector.extract_strided_slice %2 {offsets = [0, 5], sizes = [8, 1], strides = [1, 1]} : vector<8x128xf32> to vector<8x1xf32>
    %14 = vector.extract_strided_slice %2 {offsets = [0, 6], sizes = [8, 1], strides = [1, 1]} : vector<8x128xf32> to vector<8x1xf32>
    %15 = vector.extract_strided_slice %2 {offsets = [0, 7], sizes = [8, 1], strides = [1, 1]} : vector<8x128xf32> to vector<8x1xf32>
    %16 = vector.extract_strided_slice %2 {offsets = [0, 8], sizes = [8, 1], strides = [1, 1]} : vector<8x128xf32> to vector<8x1xf32>
    %17 = vector.extract_strided_slice %2 {offsets = [0, 9], sizes = [8, 1], strides = [1, 1]} : vector<8x128xf32> to vector<8x1xf32>
    %c1_i32 = arith.constant 1 : i32
    %18 = tpu.dynamic_rotate %1 by %c1_i32 dim 1 : vector<8x256xf32>, i32 -> vector<8x256xf32>
    %19 = vector.broadcast %4 : vector<1x256xf32> to vector<8x256xf32>
    %20 = arith.mulf %18, %19 : vector<8x256xf32>
    %c255_i32 = arith.constant 255 : i32
    %21 = tpu.dynamic_rotate %1 by %c255_i32 dim 1 : vector<8x256xf32>, i32 -> vector<8x256xf32>
    %22 = vector.broadcast %5 : vector<1x256xf32> to vector<8x256xf32>
    %23 = arith.mulf %21, %22 : vector<8x256xf32>
    %24 = vector.broadcast %11 : vector<8x1xf32> to vector<8x256xf32>
    %25 = arith.mulf %20, %24 : vector<8x256xf32>
    %26 = vector.broadcast %12 : vector<8x1xf32> to vector<8x256xf32>
    %27 = arith.mulf %1, %26 : vector<8x256xf32>
    %28 = arith.addf %25, %27 : vector<8x256xf32>
    %29 = vector.broadcast %13 : vector<8x1xf32> to vector<8x256xf32>
    %30 = arith.mulf %23, %29 : vector<8x256xf32>
    %31 = arith.addf %28, %30 : vector<8x256xf32>
    %32 = vector.broadcast %17 : vector<8x1xf32> to vector<8x256xf32>
    %33 = arith.addf %31, %32 : vector<8x256xf32>
    %34 = vector.broadcast %8 : vector<8x1xf32> to vector<8x256xf32>
    %35 = arith.mulf %20, %34 : vector<8x256xf32>
    %36 = vector.broadcast %9 : vector<8x1xf32> to vector<8x256xf32>
    %37 = arith.mulf %1, %36 : vector<8x256xf32>
    %38 = arith.addf %35, %37 : vector<8x256xf32>
    %39 = vector.broadcast %10 : vector<8x1xf32> to vector<8x256xf32>
    %40 = arith.mulf %23, %39 : vector<8x256xf32>
    %41 = arith.addf %38, %40 : vector<8x256xf32>
    %c16_i32 = arith.constant 16 : i32
    %42 = tpu.dynamic_rotate %41 by %c16_i32 dim 1 : vector<8x256xf32>, i32 -> vector<8x256xf32>
    %43 = vector.broadcast %6 : vector<1x256xf32> to vector<8x256xf32>
    %44 = arith.mulf %42, %43 : vector<8x256xf32>
    %45 = arith.addf %33, %44 : vector<8x256xf32>
    %46 = vector.broadcast %14 : vector<8x1xf32> to vector<8x256xf32>
    %47 = arith.mulf %20, %46 : vector<8x256xf32>
    %48 = vector.broadcast %15 : vector<8x1xf32> to vector<8x256xf32>
    %49 = arith.mulf %1, %48 : vector<8x256xf32>
    %50 = arith.addf %47, %49 : vector<8x256xf32>
    %51 = vector.broadcast %16 : vector<8x1xf32> to vector<8x256xf32>
    %52 = arith.mulf %23, %51 : vector<8x256xf32>
    %53 = arith.addf %50, %52 : vector<8x256xf32>
    %c240_i32 = arith.constant 240 : i32
    %54 = tpu.dynamic_rotate %53 by %c240_i32 dim 1 : vector<8x256xf32>, i32 -> vector<8x256xf32>
    %55 = vector.broadcast %7 : vector<1x256xf32> to vector<8x256xf32>
    %56 = arith.mulf %54, %55 : vector<8x256xf32>
    %57 = arith.addf %45, %56 : vector<8x256xf32>
    %c0_6 = arith.constant 0 : index
    %c0_7 = arith.constant 0 : index
    %c0_8 = arith.constant 0 : index
    %58 = vector.load %arg5[%c0_6, %c0_7, %c0_8] : memref<1x8x256xf32, #tpu.memory_space<vmem>>, vector<1x8x256xf32>
    %59 = vector.shape_cast %58 : vector<1x8x256xf32> to vector<8x256xf32>
    %60 = vector.shape_cast %57 : vector<8x256xf32> to vector<1x8x256xf32>
    tpu.vector_store %arg5[%c0_6, %c0_7, %c0_8], %60 {strides = array<i32>} : memref<1x8x256xf32, #tpu.memory_space<vmem>>, vector<1x8x256xf32>,
    return
  }
  func.func @transform_0(%arg0: i32, %arg1: i32) -> (i32, i32) {
    %c0_i32 = arith.constant 0 : i32
    %c0_i32_0 = arith.constant 0 : i32
    %c0_i32_1 = arith.constant 0 : i32
    return %c0_i32, %c0_i32_0 : i32, i32
  }
  func.func @transform_1(%arg0: i32, %arg1: i32) -> (i32, i32) {
    %c0_i32 = arith.constant 0 : i32
    %c0_i32_0 = arith.constant 0 : i32
    return %arg0, %c0_i32 : i32, i32
  }
  func.func @transform_2(%arg0: i32, %arg1: i32) -> (i32, i32, i32) {
    %c0_i32 = arith.constant 0 : i32
    %c0_i32_0 = arith.constant 0 : i32
    return %arg1, %arg0, %c0_i32 : i32, i32, i32
  }
  func.func @transform_3(%arg0: i32, %arg1: i32) -> (i32, i32, i32) {
    %c0_i32 = arith.constant 0 : i32
    %c0_i32_0 = arith.constant 0 : i32
    return %arg1, %arg0, %c0_i32 : i32, i32, i32
  }
}

</mosaic_0001>

<llo_original>
// kernel: tpu_custom_call.1
$region0: #{tpu_custom_call.1}
  #allocation0 [shape = 'u32[]', space=smem, size = 0x4, offset = 0x4, fixed_abs, tag = 'smem constant byte address 0x4 - core index']
  #allocation1 [shape = 'u32[72,128]{1,0:T(1,128)}', space=vmem, size = 0x9000, scoped, tag = 'internal scratch']
  %s0 = inlined_call_operand.hbm [shape: f32[8,256], index: 0, kind: input, shape index: {}]
  %s1 = inlined_call_operand.hbm [shape: f32[32,128], index: 1, kind: input, shape index: {}]
  %s2 = inlined_call_operand.hbm [shape: f32[2,32,256], index: 2, kind: input, shape index: {}]
  %s3 = inlined_call_operand.hbm [shape: f32[2,32,256], index: 3, kind: output, shape index: {}]
  %s4 = sld [smem:[#allocation0]]
  $region57: #{tpu_custom_call.1} parent=0
    _
  %s6 = ssub.s32 1, %s4
  %s7 = scalar_select 0, %s6, %s4
  $region1: #{tpu_custom_call.1} parent=0
    #allocation2 [shape = 'u8[8192]{0}', space=vmem, size = 0x2000, scoped, tag = 'input window, operand 0, single buffered']
    #allocation3 [shape = 's32[2]{0}', space=sflag, size = 0x8, scoped, tag = 'scoped memory for tpu_custom_call.1']
    #allocation4 [shape = 's32[2]{0}', space=sflag, size = 0x8, scoped, tag = 'scoped memory for tpu_custom_call.1']
    #allocation5 [shape = 'u8[8192]{0}', space=vmem, size = 0x2000, scoped, tag = 'input window, operand 1']
    #allocation6 [shape = 's32[2]{0}', space=sflag, size = 0x8, scoped, tag = 'scoped memory for tpu_custom_call.1']
    #allocation7 [shape = 'u8[16384]{0}', space=vmem, size = 0x4000, scoped, tag = 'input window, operand 2']
    #allocation8 [shape = 'u8[16384]{0}', space=vmem, size = 0x4000, scoped, tag = 'output window, operand 0']
    %8 = vsyncpa [#allocation3], 0
    %9 = vsyncpa [#allocation6], 0
    %s10 = scalar_lea.sflag [#allocation6], 1
    %11 = vsyncpa %s10, 0
    %12 = vsyncpa [#allocation4], 0
    %s13 = scalar_lea.sflag [#allocation4], 1
    %14 = vsyncpa %s13, 0
    loop: start=0, step=1, limit=10
    $region2: #{tpu_custom_call.1} parent=1 // loop_pre_header
      _
    $region3: #{tpu_custom_call.1} parent=1 // loop_header
      %s16 = sphi 0, %s20
      %p17 = scmp.ge.s32.totalorder %s16, 10
      %s23 = sphi 0, %s35
      %s24 = sphi 0, %s31
      %s25 = sphi 0, %s23
      %s26 = sphi 0, %s24
      %s27 = sphi 0, %s25
      %s28 = sphi 0, %s26
      %s36 = sphi 0, %s36
      %s38 = sphi 0, %s36
      %s39 = sphi 0, %s38
      %s53 = sphi 0, %s39
      %s59 = sphi 0, %s61
      %s62 = sphi 0, %s59
      %s63 = sphi 0, %s62
      %s79 = sphi 0, %s63
      %s87 = sphi 0, %s89
      %s90 = sphi 0, %s87
      %s91 = sphi 0, %s90
      %s107 = sphi 0, %s91
      %s115 = sphi 0, %s117
      %s118 = sphi 0, %s115
      %s119 = sphi 0, %s118
      %s135 = sphi 0, %s119
    $region4: #{tpu_custom_call.1} parent=1 // loop_header_branch
      %19 = sbr.rel (%p17) target = $region8
    $region5: #{tpu_custom_call.1} parent=1 // loop_body
      %s21 = ssub.s32 %s16, 1
      %s22 = ssub.s32 %s16, 2
      %s29 = sadd.s32 1, %s24
      %p30 = scmp.ge.s32.totalorder %s29, 2
      %s31 = scalar_select %p30, 0, %s29
      %s32 = sadd.s32 1, %s23
      %s33 = scalar_select %p30, %s32, %s23
      %p34 = scmp.ge.s32.totalorder %s33, 4
      %s35 = scalar_select %p34, 0, %s33
      %s37 = sadd.s32 %s36, 1
      %p40 = scmp.eq.s32.totalorder %s16, 7
      %p41 = scmp.ne.s32.totalorder %s36, %s38
      %p42 = scmp.eq.s32.totalorder %s16, 0
      %p43 = por %p41, %p42
      %p44 = scmp.ne.s32.totalorder %s36, %s38
      %p45 = scmp.eq.s32.totalorder %s21, 7
      %p46 = por %p44, %p45
      %p47 = scmp.ne.s32.totalorder %s38, %s39
      %p48 = scmp.eq.s32.totalorder %s21, 0
      %p49 = por %p47, %p48
      %p50 = scmp.ne.s32.totalorder %s38, %s39
      %p51 = scmp.eq.s32.totalorder %s22, 7
      %p52 = por %p50, %p51
      %p54 = scmp.ne.s32.totalorder %s39, %s53
      %p55 = scmp.eq.s32.totalorder %s22, 0
      %p56 = por %p54, %p55
      %s57 = ssub.s32 %s23, %s35
      %p58 = scmp.eq.s32.totalorder %s57, 0
      %s60 = sadd.s32 %s59, 1
      %s61 = scalar_select %p58, %s59, %s60
      %p64 = pneg %p58
      %p65 = scmp.eq.s32.totalorder %s16, 7
      %p66 = por %p64, %p65
      %p67 = scmp.ne.s32.totalorder %s59, %s62
      %p68 = scmp.eq.s32.totalorder %s16, 0
      %p69 = por %p67, %p68
      %p70 = scmp.ne.s32.totalorder %s59, %s62
      %p71 = scmp.eq.s32.totalorder %s21, 7
      %p72 = por %p70, %p71
      %p73 = scmp.ne.s32.totalorder %s62, %s63
      %p74 = scmp.eq.s32.totalorder %s21, 0
      %p75 = por %p73, %p74
      %p76 = scmp.ne.s32.totalorder %s62, %s63
      %p77 = scmp.eq.s32.totalorder %s22, 7
      %p78 = por %p76, %p77
      %p80 = scmp.ne.s32.totalorder %s63, %s79
      %p81 = scmp.eq.s32.totalorder %s22, 0
      %p82 = por %p80, %p81
      %s83 = ssub.s32 %s24, %s31
      %s84 = ssub.s32 %s23, %s35
      %s85 = sor.u32 %s83, %s84
      %p86 = scmp.eq.s32.totalorder %s85, 0
      %s88 = sadd.s32 %s87, 1
      %s89 = scalar_select %p86, %s87, %s88
      %p92 = pneg %p86
      %p93 = scmp.eq.s32.totalorder %s16, 7
      %p94 = por %p92, %p93
      %p95 = scmp.ne.s32.totalorder %s87, %s90
      %p96 = scmp.eq.s32.totalorder %s16, 0
      %p97 = por %p95, %p96
      %p98 = scmp.ne.s32.totalorder %s87, %s90
      %p99 = scmp.eq.s32.totalorder %s21, 7
      %p100 = por %p98, %p99
      %p101 = scmp.ne.s32.totalorder %s90, %s91
      %p102 = scmp.eq.s32.totalorder %s21, 0
      %p103 = por %p101, %p102
      %p104 = scmp.ne.s32.totalorder %s90, %s91
      %p105 = scmp.eq.s32.totalorder %s22, 7
      %p106 = por %p104, %p105
      %p108 = scmp.ne.s32.totalorder %s91, %s107
      %p109 = scmp.eq.s32.totalorder %s22, 0
      %p110 = por %p108, %p109
      %s111 = ssub.s32 %s24, %s31
      %s112 = ssub.s32 %s23, %s35
      %s113 = sor.u32 %s111, %s112
      %p114 = scmp.eq.s32.totalorder %s113, 0
      %s116 = sadd.s32 %s115, 1
      %s117 = scalar_select %p114, %s115, %s116
      %p120 = pneg %p114
      %p121 = scmp.eq.s32.totalorder %s16, 7
      %p122 = por %p120, %p121
      %p123 = scmp.ne.s32.totalorder %s115, %s118
      %p124 = scmp.eq.s32.totalorder %s16, 0
      %p125 = por %p123, %p124
      %p126 = scmp.ne.s32.totalorder %s115, %s118
      %p127 = scmp.eq.s32.totalorder %s21, 7
      %p128 = por %p126, %p127
      %p129 = scmp.ne.s32.totalorder %s118, %s119
      %p130 = scmp.eq.s32.totalorder %s21, 0
      %p131 = por %p129, %p130
      %p132 = scmp.ne.s32.totalorder %s118, %s119
      %p133 = scmp.eq.s32.totalorder %s22, 7
      %p134 = por %p132, %p133
      %p136 = scmp.ne.s32.totalorder %s119, %s135
      %p137 = scmp.eq.s32.totalorder %s22, 0
      %p138 = por %p136, %p137
      %p139 = scmp.le.s32.totalorder 1, %s16
      %p140 = scmp.lt.s32.totalorder %s16, 9
      %p141 = pnand %p139, %p140
      %p142 = pneg %p141
      // Predicated region
      $region9: #{tpu_custom_call.1} parent=5 // pred_check
        _
      $region10: #{tpu_custom_call.1} parent=5 // pred_check_branch
        %144 = sbr.rel (%p141) target = $region12
      $region11: #{tpu_custom_call.1} parent=5 // pred_region
        %s145 = ssub.s32 %s16, 1
        // Predicated region
        $region13: #{tpu_custom_call.1} parent=11 // pred_check
          %p146 = pneg %p49
        $region14: #{tpu_custom_call.1} parent=11 // pred_check_branch
          %148 = sbr.rel (%p146) target = $region16
        $region15: #{tpu_custom_call.1} parent=11 // pred_region
          %150 = vsyncadd [#allocation3], 0
          %s152 = sshll.u32 %s0, 4
          %s153 = int_to_ptr.hbm [resolvable:$true] %s152
          %s154 = sshll.u32 [#allocation2], 4
          %s155 = int_to_ptr.vmem [resolvable:$true] %s154
          %157 = dma.hbm_to_vmem [thread:$0]  %s153, 256, %s155, [#allocation3]
        $region16: #{tpu_custom_call.1} parent=11 // pred_fallthru
          _
      $region12: #{tpu_custom_call.1} parent=5 // pred_fallthru
        _
      %p158 = scmp.lt.s32.totalorder %s16, 8
      // Predicated region
      $region17: #{tpu_custom_call.1} parent=5 // pred_check
        %p159 = pneg %p158
      $region18: #{tpu_custom_call.1} parent=5 // pred_check_branch
        %161 = sbr.rel (%p159) target = $region20
      $region19: #{tpu_custom_call.1} parent=5 // pred_region
        // Predicated region
        $region21: #{tpu_custom_call.1} parent=19 // pred_check
          %p162 = pneg %p69
        $region22: #{tpu_custom_call.1} parent=19 // pred_check_branch
          %164 = sbr.rel (%p162) target = $region24
        $region23: #{tpu_custom_call.1} parent=19 // pred_region
          %s165 = sand.u32 %s16, 1
          %s166 = scalar_lea.sflag [#allocation6], %s165
          %s167 = sand.u32 %s59, 1
          %s168 = smul.addr %s167, 8
          %s169 = scalar_lea.vmem [#allocation5], %s168
          %171 = vsyncadd %s166, 0
          %s172 = smul.addr %s23, 8
          %s173 = scalar_lea.hbm %s1, %s172
          %s175 = sshll.u32 %s173, 4
          %s176 = int_to_ptr.hbm [resolvable:$true] %s175
          %s177 = sshll.u32 %s169, 4
          %s178 = int_to_ptr.vmem [resolvable:$true] %s177
          %180 = dma.hbm_to_vmem [thread:$0]  %s176, 128, %s178, %s166
        $region24: #{tpu_custom_call.1} parent=19 // pred_fallthru
          _
        // Predicated region
        $region25: #{tpu_custom_call.1} parent=19 // pred_check
          %p181 = pneg %p97
        $region26: #{tpu_custom_call.1} parent=19 // pred_check_branch
          %183 = sbr.rel (%p181) target = $region28
        $region27: #{tpu_custom_call.1} parent=19 // pred_region
          %s184 = sand.u32 %s16, 1
          %s185 = scalar_lea.sflag [#allocation6], %s184
          %s186 = sand.u32 %s87, 1
          %s187 = smul.addr %s186, 16
          %s188 = scalar_lea.vmem [#allocation7], %s187
          %190 = vsyncadd %s185, 0
          %s191 = smul.addr %s23, 2
          %s192 = smul.addr %s24, 8
          %s193 = sadd.s32 %s191, %s192
          %s194 = smul.addr %s193, 8
          %s195 = scalar_lea.hbm %s2, %s194
          %s197 = sshll.u32 %s195, 4
          %s198 = int_to_ptr.hbm [resolvable:$true] %s197
          %s199 = sshll.u32 %s188, 4
          %s200 = int_to_ptr.vmem [resolvable:$true] %s199
          %202 = dma.hbm_to_vmem [thread:$0]  %s198, 256, %s200, %s185
        $region28: #{tpu_custom_call.1} parent=19 // pred_fallthru
          _
      $region20: #{tpu_custom_call.1} parent=5 // pred_fallthru
        _
      %p203 = scmp.le.s32.totalorder 1, %s16
      %p204 = scmp.lt.s32.totalorder %s16, 9
      %p205 = pnand %p203, %p204
      %p206 = pneg %p205
      // Predicated region
      $region29: #{tpu_custom_call.1} parent=5 // pred_check
        _
      $region30: #{tpu_custom_call.1} parent=5 // pred_check_branch
        %208 = sbr.rel (%p205) target = $region32
      $region31: #{tpu_custom_call.1} parent=5 // pred_region
        %s209 = ssub.s32 %s16, 1
        // Predicated region
        $region33: #{tpu_custom_call.1} parent=31 // pred_check
          %p210 = pneg %p49
        $region34: #{tpu_custom_call.1} parent=31 // pred_check_branch
          %212 = sbr.rel (%p210) target = $region36
        $region35: #{tpu_custom_call.1} parent=31 // pred_region
          %214 = dma.done [#allocation3], 256
        $region36: #{tpu_custom_call.1} parent=31 // pred_fallthru
          _
        %s215 = sand.u32 %s21, 1
        %s216 = scalar_lea.sflag [#allocation6], %s215
        %s217 = sand.u32 %s62, 1
        %s218 = smul.addr %s217, 8
        %s219 = scalar_lea.vmem [#allocation5], %s218
        // Predicated region
        $region37: #{tpu_custom_call.1} parent=31 // pred_check
          %p220 = pneg %p75
        $region38: #{tpu_custom_call.1} parent=31 // pred_check_branch
          %222 = sbr.rel (%p220) target = $region40
        $region39: #{tpu_custom_call.1} parent=31 // pred_region
          %224 = dma.done %s216, 128
        $region40: #{tpu_custom_call.1} parent=31 // pred_fallthru
          _
        %s225 = sand.u32 %s21, 1
        %s226 = scalar_lea.sflag [#allocation6], %s225
        %s227 = sand.u32 %s90, 1
        %s228 = smul.addr %s227, 16
        %s229 = scalar_lea.vmem [#allocation7], %s228
        // Predicated region
        $region41: #{tpu_custom_call.1} parent=31 // pred_check
          %p230 = pneg %p103
        $region42: #{tpu_custom_call.1} parent=31 // pred_check_branch
          %232 = sbr.rel (%p230) target = $region44
        $region43: #{tpu_custom_call.1} parent=31 // pred_region
          %234 = dma.done %s226, 256
        $region44: #{tpu_custom_call.1} parent=31 // pred_fallthru
          _
        %p235 = pneg %p49
        %p236 = pneg %p46
        %s237 = sand.u32 %s21, 1
        %s238 = scalar_lea.sflag [#allocation6], %s237
        %s239 = sand.u32 %s62, 1
        %s240 = smul.addr %s239, 8
        %s241 = scalar_lea.vmem [#allocation5], %s240
        %p242 = pneg %p75
        %p243 = pneg %p72
        %s244 = sand.u32 %s21, 1
        %s245 = scalar_lea.sflag [#allocation6], %s244
        %s246 = sand.u32 %s90, 1
        %s247 = smul.addr %s246, 16
        %s248 = scalar_lea.vmem [#allocation7], %s247
        %p249 = pneg %p103
        %p250 = pneg %p100
        %p251 = pneg %p131
        %p252 = pneg %p128
        %s253 = sand.u32 %s118, 1
        %s254 = scalar_lea.sflag [#allocation4], %s253
        %s255 = sand.u32 %s118, 1
        %s256 = smul.addr %s255, 16
        %s257 = scalar_lea.vmem [#allocation8], %s256
        %v258 = vld [vmem:[%s229] sm:$0xff]
        %v259 = vld [vmem:[%s229 + $0x8] sm:$0xff]
        %v260 = vld [vmem:[%s219] sm:$0xff]
        %v261 = vld [vmem:[#allocation2] sm:$0xff]
        %v262 = vld [vmem:[#allocation2 + $0x8] sm:$0xff]
        %263 = vrot.lane.b32.xlu0 %v258, 1
        %v264 = vpop.permute.xlu0 %263
        %265 = vrot.lane.b32.xlu0 %v259, 1
        %v266 = vpop.permute.xlu0 %265
        %v267 = vlaneseq
        %v268 = vand.u32 %v267, 127
        %vm269 = vcmp.lt.s32.totalorder %v268, 1
        %v270 = vsel %vm269, %v264, %v266
        %v271 = vsel %vm269, %v266, %v264
        %v272 = vperm.slane %v261, 0
        %v273 = vperm.slane %v262, 0
        %v274 = vmul.f32 %v271, %v272
        %v275 = vmul.f32 %v270, %v273
        %276 = vrot.lane.b32.xlu0 %v258, 127
        %v277 = vpop.permute.xlu0 %276
        %278 = vrot.lane.b32.xlu0 %v259, 127
        %v279 = vpop.permute.xlu0 %278
        %vm280 = vcmp.lt.s32.totalorder %v268, 127
        %v281 = vsel %vm280, %v277, %v279
        %v282 = vsel %vm280, %v279, %v277
        %v283 = vperm.slane %v261, 1
        %v284 = vperm.slane %v262, 1
        %v285 = vmul.f32 %v281, %v283
        %v286 = vmul.f32 %v282, %v284
        %288 = vset.pattern.permute.xlu0 3
        %289 = vperm.xlu0 %288, %v260
        %v290 = vpop.permute.xlu0 %289
        %v292 = vmul.f32 %v274, %v290
        %v293 = vmul.f32 %v275, %v290
        %294 = vset.pattern.permute.xlu0 4
        %295 = vperm.xlu0 %294, %v260
        %v296 = vpop.permute.xlu0 %295
        %v298 = vmul.f32 %v258, %v296
        %v299 = vmul.f32 %v259, %v296
        %v300 = vadd.f32 %v292, %v298
        %v301 = vadd.f32 %v293, %v299
        %302 = vset.pattern.permute.xlu0 5
        %303 = vperm.xlu0 %302, %v260
        %v304 = vpop.permute.xlu0 %303
        %v306 = vmul.f32 %v285, %v304
        %v307 = vmul.f32 %v286, %v304
        %v308 = vadd.f32 %v300, %v306
        %v309 = vadd.f32 %v301, %v307
        %310 = vset.pattern.permute.xlu0 9
        %311 = vperm.xlu0 %310, %v260
        %v312 = vpop.permute.xlu0 %311
        %v314 = vadd.f32 %v308, %v312
        %v315 = vadd.f32 %v309, %v312
        %316 = vset.pattern.permute.xlu0 0
        %317 = vperm.xlu0 %316, %v260
        %v318 = vpop.permute.xlu0 %317
        %v320 = vmul.f32 %v274, %v318
        %v321 = vmul.f32 %v275, %v318
        %322 = vset.pattern.permute.xlu0 1
        %323 = vperm.xlu0 %322, %v260
        %v324 = vpop.permute.xlu0 %323
        %v326 = vmul.f32 %v258, %v324
        %v327 = vmul.f32 %v259, %v324
        %v328 = vadd.f32 %v320, %v326
        %v329 = vadd.f32 %v321, %v327
        %330 = vset.pattern.permute.xlu0 2
        %331 = vperm.xlu0 %330, %v260
        %v332 = vpop.permute.xlu0 %331
        %v334 = vmul.f32 %v285, %v332
        %v335 = vmul.f32 %v286, %v332
        %v336 = vadd.f32 %v328, %v334
        %v337 = vadd.f32 %v329, %v335
        %338 = vrot.lane.b32.xlu0 %v336, 16
        %v339 = vpop.permute.xlu0 %338
        %340 = vrot.lane.b32.xlu0 %v337, 16
        %v341 = vpop.permute.xlu0 %340
        %vm342 = vcmp.lt.s32.totalorder %v268, 16
        %v343 = vsel %vm342, %v339, %v341
        %v344 = vsel %vm342, %v341, %v339
        %v345 = vperm.slane %v261, 2
        %v346 = vperm.slane %v262, 2
        %v347 = vmul.f32 %v344, %v345
        %v348 = vmul.f32 %v343, %v346
        %v349 = vadd.f32 %v314, %v347
        %v350 = vadd.f32 %v315, %v348
        %351 = vset.pattern.permute.xlu0 6
        %352 = vperm.xlu0 %351, %v260
        %v353 = vpop.permute.xlu0 %352
        %v355 = vmul.f32 %v274, %v353
        %v356 = vmul.f32 %v275, %v353
        %357 = vset.pattern.permute.xlu0 7
        %358 = vperm.xlu0 %357, %v260
        %v359 = vpop.permute.xlu0 %358
        %v361 = vmul.f32 %v258, %v359
        %v362 = vmul.f32 %v259, %v359
        %v363 = vadd.f32 %v355, %v361
        %v364 = vadd.f32 %v356, %v362
        %365 = vset.pattern.permute.xlu0 8
        %366 = vperm.xlu0 %365, %v260
        %v367 = vpop.permute.xlu0 %366
        %v369 = vmul.f32 %v285, %v367
        %v370 = vmul.f32 %v286, %v367
        %v371 = vadd.f32 %v363, %v369
        %v372 = vadd.f32 %v364, %v370
        %373 = vrot.lane.b32.xlu0 %v371, 112
        %v374 = vpop.permute.xlu0 %373
        %375 = vrot.lane.b32.xlu0 %v372, 112
        %v376 = vpop.permute.xlu0 %375
        %vm377 = vcmp.lt.s32.totalorder %v268, 112
        %v378 = vsel %vm377, %v374, %v376
        %v379 = vsel %vm377, %v376, %v374
        %v380 = vperm.slane %v261, 3
        %v381 = vperm.slane %v262, 3
        %v382 = vmul.f32 %v378, %v380
        %v383 = vmul.f32 %v379, %v381
        %v384 = vadd.f32 %v349, %v382
        %v385 = vadd.f32 %v350, %v383
        %386 = vst [vmem:[%s257] sm:$0xff] %v384
        %387 = vst [vmem:[%s257 + $0x8] sm:$0xff] %v385
        %s388 = sand.u32 %s118, 1
        %s389 = scalar_lea.sflag [#allocation4], %s388
        %s390 = sand.u32 %s118, 1
        %s391 = smul.addr %s390, 16
        %s392 = scalar_lea.vmem [#allocation8], %s391
        // Predicated region
        $region45: #{tpu_custom_call.1} parent=31 // pred_check
          %p393 = pneg %p128
        $region46: #{tpu_custom_call.1} parent=31 // pred_check_branch
          %395 = sbr.rel (%p393) target = $region48
        $region47: #{tpu_custom_call.1} parent=31 // pred_region
          %397 = vsyncadd %s389, 0
          %s398 = smul.addr %s25, 2
          %s399 = smul.addr %s26, 8
          %s400 = sadd.s32 %s398, %s399
          %s401 = smul.addr %s400, 8
          %s402 = scalar_lea.hbm %s3, %s401
          %s404 = sshll.u32 %s392, 4
          %s405 = int_to_ptr.vmem [resolvable:$true] %s404
          %s406 = sshll.u32 %s402, 4
          %s407 = int_to_ptr.hbm [resolvable:$true] %s406
          %409 = dma.vmem_to_hbm [thread:$0]  %s405, 256, %s407, %s389
        $region48: #{tpu_custom_call.1} parent=31 // pred_fallthru
          _
      $region32: #{tpu_custom_call.1} parent=5 // pred_fallthru
        _
      %p410 = scmp.le.s32.totalorder 2, %s16
      // Predicated region
      $region49: #{tpu_custom_call.1} parent=5 // pred_check
        %p411 = pneg %p410
      $region50: #{tpu_custom_call.1} parent=5 // pred_check_branch
        %413 = sbr.rel (%p411) target = $region52
      $region51: #{tpu_custom_call.1} parent=5 // pred_region
        %s414 = ssub.s32 %s16, 2
        // Predicated region
        $region53: #{tpu_custom_call.1} parent=51 // pred_check
          %p415 = pneg %p134
        $region54: #{tpu_custom_call.1} parent=51 // pred_check_branch
          %417 = sbr.rel (%p415) target = $region56
        $region55: #{tpu_custom_call.1} parent=51 // pred_region
          %s418 = sand.u32 %s119, 1
          %s419 = scalar_lea.sflag [#allocation4], %s418
          %s420 = sand.u32 %s119, 1
          %s421 = smul.addr %s420, 16
          %s422 = scalar_lea.vmem [#allocation8], %s421
          %424 = dma.done %s419, 256
        $region56: #{tpu_custom_call.1} parent=51 // pred_fallthru
          _
      $region52: #{tpu_custom_call.1} parent=5 // pred_fallthru
        _
    $region6: #{tpu_custom_call.1} parent=1 // loop_footer
      %s20 = sadd.s32 1, %s16
    $region7: #{tpu_custom_call.1} parent=1 // loop_footer_branch
      %15 = sbr.rel target = $region3
    $region8: #{tpu_custom_call.1} parent=1 // loop_exit
      _
    %425 = vsyncpa [#allocation3], 1
    %s426 = scalar_lea.sflag [#allocation3], 1
    %427 = vsyncpa %s426, 1
    %428 = vsyncpa [#allocation6], 1
    %s429 = scalar_lea.sflag [#allocation6], 1
    %430 = vsyncpa %s429, 1
    %431 = vsyncpa [#allocation4], 1
    %s432 = scalar_lea.sflag [#allocation4], 1
    %433 = vsyncpa %s432, 1

</llo_original>
